<compile_context>
chip_gen: v7x
topology: tpu7x:2x2x1
jax: 0.10.0
libtpu: 0.0.40
codegen_flags: <defaults>
</compile_context>

<pallas_src>
import numpy as np

import jax
import jax.numpy as jnp
from jax.experimental import pallas as pl
from jax.experimental.pallas import tpu as pltpu

# ----------------------- small hyper-params (consistent with the module) -----
NUM_ENT   = 64
NUM_REL   = 8            # init_rel has 2*num_rel rows (score_func != 'transe')
EMBED_DIM = 32           # == init_dim (GNN encoder disabled) == k_w * k_h
K_W, K_H  = 4, 8
NUM_FILT  = 4
KER_SZ    = 3
BATCH     = 8
EPS       = 1e-5         # PyTorch BatchNorm default eps

HC = 2 * K_W - KER_SZ + 1          # flat_sz_h = 6
WC = K_H - KER_SZ + 1              # flat_sz_w = 6
FLAT_SZ = HC * WC * NUM_FILT       # 144
K2 = KER_SZ * KER_SZ               # 9
FLAT_PAD = 256                     # FLAT_SZ zero-padded to a multiple of 128
ENT_PAD = ((NUM_ENT + 127) // 128) * 128       # 128: lane-dense scoring width
REL_PAD = ((2 * NUM_REL + 127) // 128) * 128   # 128: lane-dense one-hot width


# ----------------------- single fused Pallas kernel --------------------------
def fused_forward_kernel(sub_ref, rel_ref, ent_ref, reltab_ref,
                         w1s_ref, w1r_ref, b1_ref, w2_ref, b2_ref,
                         entb_ref, o_ref):
    # sub_ref    : (B, 1)           int32 VMEM  subject indices
    # rel_ref    : (B, 1)           int32 VMEM  relation indices
    # ent_ref    : (ENT_PAD, D)     bf16  VMEM  single entity table (gather + scoring)
    # reltab_ref : (REL_PAD, D)     bf16  VMEM  relation table (rows >= 2*NUM_REL are 0)
    # w1s_ref    : (D, FLAT_PAD)    bf16  VMEM  sub half of folded concat/bn0/conv/bn1
    # w1r_ref    : (D, FLAT_PAD)    bf16  VMEM  rel half of folded concat/bn0/conv/bn1
    # b1_ref     : (1, FLAT_PAD)    f32   VMEM
    # w2_ref     : (FLAT_PAD, D)    bf16  VMEM  fc (+bn2) folded weight
    # b2_ref     : (1, D)           f32   VMEM
    # entb_ref   : (1, ENT_PAD)     f32   VMEM  per-entity bias (zero padded)
    # o_ref      : (B, ENT_PAD)     f32   VMEM  sigmoid scores
    B = BATCH

    # Vectorized one-hot gather masks: no scalar-unit dependency chain.
    ent_iota = jax.lax.broadcasted_iota(jnp.int32, (B, ENT_PAD), 1)
    rel_iota = jax.lax.broadcasted_iota(jnp.int32, (B, REL_PAD), 1)
    oh_sub = jnp.where(ent_iota == sub_ref[...], 1.0, 0.0).astype(jnp.bfloat16)
    oh_rel = jnp.where(rel_iota == rel_ref[...], 1.0, 0.0).astype(jnp.bfloat16)

    # Embedding gather as bf16 MXU matmuls from the VMEM-resident tables.
    sub_emb = jnp.dot(oh_sub, ent_ref[...],
                      preferred_element_type=jnp.float32)          # (B, D) f32
    rel_emb = jnp.dot(oh_rel, reltab_ref[...],
                      preferred_element_type=jnp.float32)          # (B, D) f32

    # concat + bn0 + conv(+bias) + bn1 (all linear) as split dense matmuls; the
    # columns of W1 already follow PyTorch's NCHW x.view(-1, flat_sz) order.
    flat = jnp.dot(sub_emb.astype(jnp.bfloat16), w1s_ref[...],
                   preferred_element_type=jnp.float32)
    flat = flat + jnp.dot(rel_emb.astype(jnp.bfloat16), w1r_ref[...],
                          preferred_element_type=jnp.float32)
    flat = jnp.maximum(flat + b1_ref[...], 0.0)                    # (B, FLAT_PAD)

    # fc + bn2 (folded) + relu
    h = jnp.dot(flat.astype(jnp.bfloat16), w2_ref[...],
                preferred_element_type=jnp.float32)
    h = jnp.maximum(h + b2_ref[...], 0.0)                          # (B, D)

    # Score against every entity (same bf16 table, contracting on D == trans_b),
    # add bias, sigmoid; single lane-dense (8,128) store.
    s = jax.lax.dot_general(h.astype(jnp.bfloat16), ent_ref[...],
                            (((1,), (1,)), ((), ())),
                            preferred_element_type=jnp.float32)    # (B, ENT_PAD)
    o_ref[...] = jax.nn.sigmoid(s + entb_ref[...])


# ----------------------- one-time parameter preparation (outside hot path) ---
def prepare_params(p):
    D = EMBED_DIM

    # eval-mode BatchNorm -> per-channel scale/shift
    bn0_s = p["bn0_g"][0] / jnp.sqrt(p["bn0_v"][0] + EPS)
    bn0_t = p["bn0_b"][0] - p["bn0_m"][0] * bn0_s
    bn1_s = p["bn1_g"] / jnp.sqrt(p["bn1_v"] + EPS)
    bn1_t = p["bn1_b"] - p["bn1_m"] * bn1_s
    bn2_s = p["bn2_g"] / jnp.sqrt(p["bn2_v"] + EPS)
    bn2_t = p["bn2_b"] - p["bn2_m"] * bn2_s

    w2d = p["conv_w"].reshape(NUM_FILT, K2)                       # (F, 9)

    # Structural tensor A[c, p, k] = 1 iff conv tap k at output position p reads
    # concat element c.  Image element (r, c) of the (2*k_w, k_h) image equals
    # concat[r*(K_H//2) + c//2 + D*(c%2)]  (the module's view/cat/transpose/reshape).
    A = np.zeros((2 * D, HC * WC, K2), np.float32)
    for oh in range(HC):
        for ow in range(WC):
            for i in range(KER_SZ):
                for j in range(KER_SZ):
                    r, c = oh + i, ow + j
                    cidx = r * (K_H // 2) + c // 2 + D * (c % 2)
                    A[cidx, oh * WC + ow, i * KER_SZ + j] += 1.0

    # Fold bn0 & bn1 into the conv, and the conv structure + NCHW flatten into W1.
    w_eff = (bn0_s * bn1_s[:, None]) * w2d                                   # (F, 9)
    W1 = jnp.einsum("cpk,fk->cfp", jnp.asarray(A), w_eff).reshape(2 * D, FLAT_SZ)
    b_eff = bn1_s * (bn0_t * w2d.sum(axis=1) + p["conv_b"]) + bn1_t          # (F,)
    b1 = jnp.repeat(b_eff, HC * WC)                                          # NCHW order

    # Fold bn2 into fc.
    W2 = (p["fc_w"] * bn2_s[:, None]).T                                      # (FLAT, D)
    b2 = (bn2_s * p["fc_b"] + bn2_t).reshape(1, D)

    # Zero-pad FLAT_SZ -> FLAT_PAD (exact: relu(0+0)=0, and padded W2 rows are 0).
    W1p = jnp.zeros((2 * D, FLAT_PAD), jnp.float32).at[:, :FLAT_SZ].set(W1)
    b1p = jnp.zeros((1, FLAT_PAD), jnp.float32).at[:, :FLAT_SZ].set(b1[None, :])
    W2p = jnp.zeros((FLAT_PAD, D), jnp.float32).at[:FLAT_SZ, :].set(W2)

    # Single bf16 entity table (rows zero-padded to ENT_PAD) used for BOTH the
    # one-hot gather and the final scoring; relation table padded likewise.
    ent = jnp.zeros((ENT_PAD, D), jnp.float32).at[:NUM_ENT, :].set(p["init_embed"])
    relt = jnp.zeros((REL_PAD, D), jnp.float32).at[:2 * NUM_REL, :].set(p["init_rel"])
    entb = jnp.zeros((1, ENT_PAD), jnp.float32).at[:, :NUM_ENT].set(p["ent_bias"][None, :])

    return {
        "ent":  ent.astype(jnp.bfloat16),
        "relt": relt.astype(jnp.bfloat16),
        "w1s":  W1p[:D, :].astype(jnp.bfloat16),
        "w1r":  W1p[D:, :].astype(jnp.bfloat16),
        "b1":   b1p.astype(jnp.float32),
        "w2":   W2p.astype(jnp.bfloat16),
        "b2":   b2.astype(jnp.float32),
        "entb": entb.astype(jnp.float32),
    }


# ----------------------- forward pass (jitted hot path: one pallas_call) -----
def compgcn_conve_forward(prep, sub, rel):
    vmem = pl.BlockSpec(memory_space=pltpu.MemorySpace.VMEM)
    scores_pad = pl.pallas_call(
        fused_forward_kernel,
        out_shape=jax.ShapeDtypeStruct((BATCH, ENT_PAD), jnp.float32),
        in_specs=[vmem] * 10,
        out_specs=vmem,
    )(sub.reshape(BATCH, 1).astype(jnp.int32),
      rel.reshape(BATCH, 1).astype(jnp.int32),
      prep["ent"], prep["relt"],
      prep["w1s"], prep["w1r"], prep["b1"], prep["w2"], prep["b2"],
      prep["entb"])
    return scores_pad[:, :NUM_ENT]


# ----------------------- pure-JAX reference (unfolded, f32) ------------------
def reference_forward(p, sub, rel):
    sub_emb = p["init_embed"][sub]
    rel_emb = p["init_rel"][rel]
    stk = jnp.concatenate([sub_emb[:, None, :], rel_emb[:, None, :]], axis=1)   # (B,2,D)
    img = jnp.transpose(stk, (0, 2, 1)).reshape(BATCH, 2 * K_W, K_H)            # (B,8,8)
    s0 = p["bn0_g"][0] / jnp.sqrt(p["bn0_v"][0] + EPS)
    t0 = p["bn0_b"][0] - p["bn0_m"][0] * s0
    img = img * s0 + t0
    patches = jnp.stack([img[:, i:i + HC, j:j + WC]
                         for i in range(KER_SZ) for j in range(KER_SZ)], axis=-1)
    w2d = p["conv_w"].reshape(NUM_FILT, K2)
    conv = jnp.einsum("bhwk,fk->bfhw", patches, w2d) + p["conv_b"][None, :, None, None]
    bn1_s = p["bn1_g"] / jnp.sqrt(p["bn1_v"] + EPS)
    bn1_t = p["bn1_b"] - p["bn1_m"] * bn1_s
    conv = conv * bn1_s[None, :, None, None] + bn1_t[None, :, None, None]
    x = jnp.maximum(conv, 0.0).reshape(BATCH, FLAT_SZ)
    x = x @ p["fc_w"].T + p["fc_b"]
    bn2_s = p["bn2_g"] / jnp.sqrt(p["bn2_v"] + EPS)
    bn2_t = p["bn2_b"] - p["bn2_m"] * bn2_s
    x = jnp.maximum(x * bn2_s + bn2_t, 0.0)
    x = x @ p["init_embed"].T + p["ent_bias"][None, :]
    return jax.nn.sigmoid(x)


# ----------------------- deterministic parameter init ------------------------
def init_params(key):
    ks = jax.random.split(key, 14)
    std = 0.1
    return {
        "init_embed": jax.random.normal(ks[0], (NUM_ENT, EMBED_DIM), jnp.float32) * std,
        "init_rel":   jax.random.normal(ks[1], (2 * NUM_REL, EMBED_DIM), jnp.float32) * std,
        "conv_w":     jax.random.normal(ks[2], (NUM_FILT, 1, KER_SZ, KER_SZ), jnp.float32) * std,
        "conv_b":     jax.random.normal(ks[3], (NUM_FILT,), jnp.float32) * std,
        "fc_w":       jax.random.normal(ks[4], (EMBED_DIM, FLAT_SZ), jnp.float32) * std,
        "fc_b":       jax.random.normal(ks[5], (EMBED_DIM,), jnp.float32) * std,
        # Non-trivial eval-mode BatchNorm stats (exercise the folding).
        "bn0_g": jax.random.uniform(ks[6], (1,), jnp.float32, 0.5, 1.5),
        "bn0_b": jax.random.normal(ks[7], (1,), jnp.float32) * std,
        "bn0_m": jax.random.normal(ks[8], (1,), jnp.float32) * std,
        "bn0_v": jax.random.uniform(ks[9], (1,), jnp.float32, 0.5, 1.5),
        "bn1_g": jax.random.uniform(ks[10], (NUM_FILT,), jnp.float32, 0.5, 1.5),
        "bn1_b": jax.random.normal(ks[11], (NUM_FILT,), jnp.float32) * std,
        "bn1_m": jax.random.normal(ks[12], (NUM_FILT,), jnp.float32) * std,
        "bn1_v": jax.random.uniform(ks[13], (NUM_FILT,), jnp.float32, 0.5, 1.5),
        "bn2_g": jnp.ones((EMBED_DIM,), jnp.float32),
        "bn2_b": jnp.zeros((EMBED_DIM,), jnp.float32),
        "bn2_m": jnp.zeros((EMBED_DIM,), jnp.float32),
        "bn2_v": jnp.ones((EMBED_DIM,), jnp.float32),
        # self.bias registered as zeros(num_ent)
        "ent_bias": jnp.zeros((NUM_ENT,), jnp.float32),
    }


if __name__ == "__main__":
    key = jax.random.PRNGKey(0)
    kp, ks, kr = jax.random.split(key, 3)
    params = init_params(kp)
    prep = prepare_params(params)          # one-time weight folding, outside the hot path
    sub = jax.random.randint(ks, (BATCH,), 0, NUM_ENT, dtype=jnp.int32)
    rel = jax.random.randint(kr, (BATCH,), 0, 2 * NUM_REL, dtype=jnp.int32)

    fwd = jax.jit(compgcn_conve_forward)
    scores = fwd(prep, sub, rel)
    jax.block_until_ready(scores)

    assert scores.shape == (BATCH, NUM_ENT) and scores.dtype == jnp.float32
    ref = reference_forward(params, sub, rel)
    max_err = float(jnp.max(jnp.abs(scores - ref)))
    assert bool(jnp.all(jnp.isfinite(scores))) and max_err < 2e-2, max_err
    print("KERNEL_OK")
</pallas_src>

<mosaic_0001>
module attributes {stable_mosaic.version = 11 : i64} {
  func.func @fused_forward_kernel(%arg0: memref<8x1xi32, #tpu.memory_space<vmem>>, %arg1: memref<8x1xi32, #tpu.memory_space<vmem>>, %arg2: memref<128x32xbf16, #tpu.memory_space<vmem>>, %arg3: memref<128x32xbf16, #tpu.memory_space<vmem>>, %arg4: memref<32x256xbf16, #tpu.memory_space<vmem>>, %arg5: memref<32x256xbf16, #tpu.memory_space<vmem>>, %arg6: memref<1x256xf32, #tpu.memory_space<vmem>>, %arg7: memref<256x32xbf16, #tpu.memory_space<vmem>>, %arg8: memref<1x32xf32, #tpu.memory_space<vmem>>, %arg9: memref<1x128xf32, #tpu.memory_space<vmem>>, %arg10: memref<8x128xf32, #tpu.memory_space<vmem>>) attributes {dimension_semantics = [], scalar_prefetch = 0 : i64, scratch_operands = 0 : i64, tpu.core_type = #tpu.core_type<tc>} {
    %0 = tpu.iota {dimensions = array<i32: 1>} : vector<8x128xi32>
    %1 = tpu.iota {dimensions = array<i32: 1>} : vector<8x128xi32>
    %c0 = arith.constant 0 : index
    %c0_0 = arith.constant 0 : index
    %2 = vector.load %arg0[%c0, %c0_0] : memref<8x1xi32, #tpu.memory_space<vmem>>, vector<8x1xi32>
    %3 = vector.broadcast %2 : vector<8x1xi32> to vector<8x128xi32>
    %4 = arith.cmpi eq, %0, %3 : vector<8x128xi32>
    %cst = arith.constant 1.000000e+00 : f32
    %cst_1 = arith.constant 0.000000e+00 : f32
    %5 = vector.broadcast %cst : f32 to vector<8x128xf32>
    %6 = vector.broadcast %cst_1 : f32 to vector<8x128xf32>
    %7 = arith.select %4, %5, %6 : vector<8x128xi1>, vector<8x128xf32>
    %8 = arith.truncf %7 : vector<8x128xf32> to vector<8x128xbf16>
    %c0_2 = arith.constant 0 : index
    %c0_3 = arith.constant 0 : index
    %9 = vector.load %arg1[%c0_2, %c0_3] : memref<8x1xi32, #tpu.memory_space<vmem>>, vector<8x1xi32>
    %10 = vector.broadcast %9 : vector<8x1xi32> to vector<8x128xi32>
    %11 = arith.cmpi eq, %1, %10 : vector<8x128xi32>
    %cst_4 = arith.constant 1.000000e+00 : f32
    %cst_5 = arith.constant 0.000000e+00 : f32
    %12 = vector.broadcast %cst_4 : f32 to vector<8x128xf32>
    %13 = vector.broadcast %cst_5 : f32 to vector<8x128xf32>
    %14 = arith.select %11, %12, %13 : vector<8x128xi1>, vector<8x128xf32>
    %15 = arith.truncf %14 : vector<8x128xf32> to vector<8x128xbf16>
    %c0_6 = arith.constant 0 : index
    %c0_7 = arith.constant 0 : index
    %16 = vector.load %arg2[%c0_6, %c0_7] : memref<128x32xbf16, #tpu.memory_space<vmem>>, vector<128x32xbf16>
    %cst_8 = arith.constant dense<0.000000e+00> : vector<8x32xf32>
    %17 = tpu.matmul %8, %16, %cst_8 {dimension_numbers = #tpu.dot_dimension_numbers<[1], [0], [0], [1], [0, 0, 1, 1], [], []>} : vector<8x128xbf16>, vector<128x32xbf16>, vector<8x32xf32> -> vector<8x32xf32>
    %c0_9 = arith.constant 0 : index
    %c0_10 = arith.constant 0 : index
    %18 = vector.load %arg3[%c0_9, %c0_10] : memref<128x32xbf16, #tpu.memory_space<vmem>>, vector<128x32xbf16>
    %cst_11 = arith.constant dense<0.000000e+00> : vector<8x32xf32>
    %19 = tpu.matmul %15, %18, %cst_11 {dimension_numbers = #tpu.dot_dimension_numbers<[1], [0], [0], [1], [0, 0, 1, 1], [], []>} : vector<8x128xbf16>, vector<128x32xbf16>, vector<8x32xf32> -> vector<8x32xf32>
    %20 = arith.truncf %17 : vector<8x32xf32> to vector<8x32xbf16>
    %c0_12 = arith.constant 0 : index
    %c0_13 = arith.constant 0 : index
    %21 = vector.load %arg4[%c0_12, %c0_13] : memref<32x256xbf16, #tpu.memory_space<vmem>>, vector<32x256xbf16>
    %cst_14 = arith.constant dense<0.000000e+00> : vector<8x256xf32>
    %22 = tpu.matmul %20, %21, %cst_14 {dimension_numbers = #tpu.dot_dimension_numbers<[1], [0], [0], [1], [0, 0, 1, 1], [], []>} : vector<8x32xbf16>, vector<32x256xbf16>, vector<8x256xf32> -> vector<8x256xf32>
    %23 = arith.truncf %19 : vector<8x32xf32> to vector<8x32xbf16>
    %c0_15 = arith.constant 0 : index
    %c0_16 = arith.constant 0 : index
    %24 = vector.load %arg5[%c0_15, %c0_16] : memref<32x256xbf16, #tpu.memory_space<vmem>>, vector<32x256xbf16>
    %cst_17 = arith.constant dense<0.000000e+00> : vector<8x256xf32>
    %25 = tpu.matmul %23, %24, %cst_17 {dimension_numbers = #tpu.dot_dimension_numbers<[1], [0], [0], [1], [0, 0, 1, 1], [], []>} : vector<8x32xbf16>, vector<32x256xbf16>, vector<8x256xf32> -> vector<8x256xf32>
    %26 = arith.addf %22, %25 : vector<8x256xf32>
    %c0_18 = arith.constant 0 : index
    %c0_19 = arith.constant 0 : index
    %27 = vector.load %arg6[%c0_18, %c0_19] : memref<1x256xf32, #tpu.memory_space<vmem>>, vector<1x256xf32>
    %28 = vector.broadcast %27 : vector<1x256xf32> to vector<8x256xf32>
    %29 = arith.addf %26, %28 : vector<8x256xf32>
    %cst_20 = arith.constant 0.000000e+00 : f32
    %30 = vector.broadcast %cst_20 : f32 to vector<8x256xf32>
    %31 = arith.maximumf %29, %30 : vector<8x256xf32>
    %32 = arith.truncf %31 : vector<8x256xf32> to vector<8x256xbf16>
    %c0_21 = arith.constant 0 : index
    %c0_22 = arith.constant 0 : index
    %33 = vector.load %arg7[%c0_21, %c0_22] : memref<256x32xbf16, #tpu.memory_space<vmem>>, vector<256x32xbf16>
    %cst_23 = arith.constant dense<0.000000e+00> : vector<8x32xf32>
    %34 = tpu.matmul %32, %33, %cst_23 {dimension_numbers = #tpu.dot_dimension_numbers<[1], [0], [0], [1], [0, 0, 1, 1], [], []>} : vector<8x256xbf16>, vector<256x32xbf16>, vector<8x32xf32> -> vector<8x32xf32>
    %c0_24 = arith.constant 0 : index
    %c0_25 = arith.constant 0 : index
    %35 = vector.load %arg8[%c0_24, %c0_25] : memref<1x32xf32, #tpu.memory_space<vmem>>, vector<1x32xf32>
    %36 = vector.broadcast %35 : vector<1x32xf32> to vector<8x32xf32>
    %37 = arith.addf %34, %36 : vector<8x32xf32>
    %cst_26 = arith.constant 0.000000e+00 : f32
    %38 = vector.broadcast %cst_26 : f32 to vector<8x32xf32>
    %39 = arith.maximumf %37, %38 : vector<8x32xf32>
    %40 = arith.truncf %39 : vector<8x32xf32> to vector<8x32xbf16>
    %c0_27 = arith.constant 0 : index
    %c0_28 = arith.constant 0 : index
    %41 = vector.load %arg2[%c0_27, %c0_28] : memref<128x32xbf16, #tpu.memory_space<vmem>>, vector<128x32xbf16>
    %cst_29 = arith.constant dense<0.000000e+00> : vector<8x128xf32>
    %42 = tpu.matmul %40, %41, %cst_29 {dimension_numbers = #tpu.dot_dimension_numbers<[1], [1], [0], [0], [0, 0, 1, 0], [], []>} : vector<8x32xbf16>, vector<128x32xbf16>, vector<8x128xf32> -> vector<8x128xf32>
    %c0_30 = arith.constant 0 : index
    %c0_31 = arith.constant 0 : index
    %43 = vector.load %arg9[%c0_30, %c0_31] : memref<1x128xf32, #tpu.memory_space<vmem>>, vector<1x128xf32>
    %44 = vector.broadcast %43 : vector<1x128xf32> to vector<8x128xf32>
    %45 = arith.addf %42, %44 : vector<8x128xf32>
    %46 = arith.negf %45 : vector<8x128xf32>
    %47 = math.exp %46 : vector<8x128xf32>
    %cst_32 = arith.constant 1.000000e+00 : f32
    %48 = vector.broadcast %cst_32 : f32 to vector<8x128xf32>
    %49 = arith.addf %48, %47 : vector<8x128xf32>
    %50 = arith.divf %48, %49 : vector<8x128xf32>
    %c0_33 = arith.constant 0 : index
    %c0_34 = arith.constant 0 : index
    %51 = vector.load %arg10[%c0_33, %c0_34] : memref<8x128xf32, #tpu.memory_space<vmem>>, vector<8x128xf32>
    tpu.vector_store %arg10[%c0_33, %c0_34], %50 {strides = array<i32>} : memref<8x128xf32, #tpu.memory_space<vmem>>, vector<8x128xf32>,
    return
  }
}

</mosaic_0001>

<llo_original>
// kernel: compgcn_conve_forward.1
$region0: #{compgcn_conve_forward.1}
  #allocation0 [shape = 'u32[]', space=smem, size = 0x4, offset = 0x4, fixed_abs, tag = 'smem constant byte address 0x4 - core index']
  #allocation1 [shape = 'u32[144,128]{1,0:T(1,128)}', space=vmem, size = 0x12000, scoped, tag = 'internal scratch']
  %s0 = inlined_call_operand.vmem [shape: s32[8,1], index: 0, kind: input, shape index: {}]
  %s1 = inlined_call_operand.vmem [shape: s32[8,1], index: 1, kind: input, shape index: {}]
  %s2 = inlined_call_operand.vmem [shape: bf16[128,32], index: 2, kind: input, shape index: {}]
  %s3 = inlined_call_operand.vmem [shape: bf16[128,32], index: 3, kind: input, shape index: {}]
  %s4 = inlined_call_operand.vmem [shape: bf16[32,256], index: 4, kind: input, shape index: {}]
  %s5 = inlined_call_operand.vmem [shape: bf16[32,256], index: 5, kind: input, shape index: {}]
  %s6 = inlined_call_operand.vmem [shape: f32[1,256], index: 6, kind: input, shape index: {}]
  %s7 = inlined_call_operand.vmem [shape: bf16[256,32], index: 7, kind: input, shape index: {}]
  %s8 = inlined_call_operand.vmem [shape: f32[1,32], index: 8, kind: input, shape index: {}]
  %s9 = inlined_call_operand.vmem [shape: f32[1,128], index: 9, kind: input, shape index: {}]
  %s10 = inlined_call_operand.hbm [shape: f32[8,128], index: 10, kind: output, shape index: {}]
  %s11 = sld [smem:[#allocation0]]
  $region50: #{compgcn_conve_forward.1} parent=0
    _
  %s13 = ssub.s32 1, %s11
  %s14 = scalar_select 0, %s13, %s11
  $region1: #{compgcn_conve_forward.1} parent=0
    #allocation2 [shape = 'u8[4096]{0}', space=vmem, size = 0x1000, scoped, tag = 'output window, operand 0, single buffered']
    #allocation3 [shape = 's32[1]{0}', space=sflag, size = 0x4, scoped, tag = 'scoped memory for compgcn_conve_forward.1']
    %15 = vsyncpa [#allocation3], 0
    // Predicated region
    $region2: #{compgcn_conve_forward.1} parent=1 // pred_check
      _
    $region3: #{compgcn_conve_forward.1} parent=1 // pred_check_branch
      %17 = sbr.rel (0) target = $region5
    $region4: #{compgcn_conve_forward.1} parent=1 // pred_region
      _
    $region5: #{compgcn_conve_forward.1} parent=1 // pred_fallthru
      _
    // Predicated region
    $region6: #{compgcn_conve_forward.1} parent=1 // pred_check
      _
    $region7: #{compgcn_conve_forward.1} parent=1 // pred_check_branch
      %19 = sbr.rel (0) target = $region9
    $region8: #{compgcn_conve_forward.1} parent=1 // pred_region
      _
    $region9: #{compgcn_conve_forward.1} parent=1 // pred_fallthru
      _
    // Predicated region
    $region10: #{compgcn_conve_forward.1} parent=1 // pred_check
      _
    $region11: #{compgcn_conve_forward.1} parent=1 // pred_check_branch
      %21 = sbr.rel (0) target = $region13
    $region12: #{compgcn_conve_forward.1} parent=1 // pred_region
      _
    $region13: #{compgcn_conve_forward.1} parent=1 // pred_fallthru
      _
    // Predicated region
    $region14: #{compgcn_conve_forward.1} parent=1 // pred_check
      _
    $region15: #{compgcn_conve_forward.1} parent=1 // pred_check_branch
      %23 = sbr.rel (0) target = $region17
    $region16: #{compgcn_conve_forward.1} parent=1 // pred_region
      _
    $region17: #{compgcn_conve_forward.1} parent=1 // pred_fallthru
      _
    // Predicated region
    $region18: #{compgcn_conve_forward.1} parent=1 // pred_check
      _
    $region19: #{compgcn_conve_forward.1} parent=1 // pred_check_branch
      %25 = sbr.rel (0) target = $region21
    $region20: #{compgcn_conve_forward.1} parent=1 // pred_region
      _
    $region21: #{compgcn_conve_forward.1} parent=1 // pred_fallthru
      _
    // Predicated region
    $region22: #{compgcn_conve_forward.1} parent=1 // pred_check
      _
    $region23: #{compgcn_conve_forward.1} parent=1 // pred_check_branch
      %27 = sbr.rel (0) target = $region25
    $region24: #{compgcn_conve_forward.1} parent=1 // pred_region
      _
    $region25: #{compgcn_conve_forward.1} parent=1 // pred_fallthru
      _
    // Predicated region
    $region26: #{compgcn_conve_forward.1} parent=1 // pred_check
      _
    $region27: #{compgcn_conve_forward.1} parent=1 // pred_check_branch
      %29 = sbr.rel (0) target = $region29
    $region28: #{compgcn_conve_forward.1} parent=1 // pred_region
      _
    $region29: #{compgcn_conve_forward.1} parent=1 // pred_fallthru
      _
    // Predicated region
    $region30: #{compgcn_conve_forward.1} parent=1 // pred_check
      _
    $region31: #{compgcn_conve_forward.1} parent=1 // pred_check_branch
      %31 = sbr.rel (0) target = $region33
    $region32: #{compgcn_conve_forward.1} parent=1 // pred_region
      _
    $region33: #{compgcn_conve_forward.1} parent=1 // pred_fallthru
      _
    // Predicated region
    $region34: #{compgcn_conve_forward.1} parent=1 // pred_check
      _
    $region35: #{compgcn_conve_forward.1} parent=1 // pred_check_branch
      %33 = sbr.rel (0) target = $region37
    $region36: #{compgcn_conve_forward.1} parent=1 // pred_region
      _
    $region37: #{compgcn_conve_forward.1} parent=1 // pred_fallthru
      _
    // Predicated region
    $region38: #{compgcn_conve_forward.1} parent=1 // pred_check
      _
    $region39: #{compgcn_conve_forward.1} parent=1 // pred_check_branch
      %35 = sbr.rel (0) target = $region41
    $region40: #{compgcn_conve_forward.1} parent=1 // pred_region
      _
    $region41: #{compgcn_conve_forward.1} parent=1 // pred_fallthru
      _
    %v37 = vlaneseq
    %v38 = vand.u32 %v37, 127
    %v39 = vld [vmem:[%s0] sm:$0xff]
    %40 = vset.pattern.permute.xlu0 0
    %41 = vperm.xlu0 %40, %v39
    %v42 = vpop.permute.xlu0 %41
    %vm43 = vcmp.eq.s32.totalorder %v38, %v42
    %v44 = vsel %vm43, 1.0, 0.0
    %v45 = vpack.c.bf16 %v44, %v44
    %v46 = vld [vmem:[%s1] sm:$0xff]
    %47 = vset.pattern.permute.xlu0 0
    %48 = vperm.xlu0 %47, %v46
    %v49 = vpop.permute.xlu0 %48
    %vm50 = vcmp.eq.s32.totalorder %v38, %v49
    %v51 = vsel %vm50, 1.0, 0.0
    %v52 = vpack.c.bf16 %v51, %v51
    %v53 = vld [vmem:[%s2] sm:$0xf]
    %v54 = vld [vmem:[%s2 + $0x4] sm:$0xf]
    %v55 = vld [vmem:[%s2 + $0x8] sm:$0xf]
    %v56 = vld [vmem:[%s2 + $0xc] sm:$0xf]
    %v57 = vld [vmem:[%s2 + $0x10] sm:$0xf]
    %v58 = vld [vmem:[%s2 + $0x14] sm:$0xf]
    %v59 = vld [vmem:[%s2 + $0x18] sm:$0xf]
    %v60 = vld [vmem:[%s2 + $0x1c] sm:$0xf]
    %v61 = vld [vmem:[%s2 + $0x20] sm:$0xf]
    %v62 = vld [vmem:[%s2 + $0x24] sm:$0xf]
    %v63 = vld [vmem:[%s2 + $0x28] sm:$0xf]
    %v64 = vld [vmem:[%s2 + $0x2c] sm:$0xf]
    %v65 = vld [vmem:[%s2 + $0x30] sm:$0xf]
    %v66 = vld [vmem:[%s2 + $0x34] sm:$0xf]
    %v67 = vld [vmem:[%s2 + $0x38] sm:$0xf]
    %v68 = vld [vmem:[%s2 + $0x3c] sm:$0xf]
    %v85 = vunpack.c.l.b16 %v53
    %v86 = vunpack.c.l.b16 %v54
    %v87 = vunpack.c.l.b16 %v55
    %v88 = vunpack.c.l.b16 %v56
    %v89 = vunpack.c.l.b16 %v57
    %v90 = vunpack.c.l.b16 %v58
    %v91 = vunpack.c.l.b16 %v59
    %v92 = vunpack.c.l.b16 %v60
    %v93 = vunpack.c.l.b16 %v61
    %v94 = vunpack.c.l.b16 %v62
    %v95 = vunpack.c.l.b16 %v63
    %v96 = vunpack.c.l.b16 %v64
    %v97 = vunpack.c.l.b16 %v65
    %v98 = vunpack.c.l.b16 %v66
    %v99 = vunpack.c.l.b16 %v67
    %v100 = vunpack.c.l.b16 %v68
    %v101 = vpack.c.b16 %v86, %v85
    %v102 = vpack.c.b16 %v88, %v87
    %v103 = vpack.c.b16 %v90, %v89
    %v104 = vpack.c.b16 %v92, %v91
    %v105 = vpack.c.b16 %v94, %v93
    %v106 = vpack.c.b16 %v96, %v95
    %v107 = vpack.c.b16 %v98, %v97
    %v108 = vpack.c.b16 %v100, %v99
    %117 = vmatprep.subr.bf16.mxu0 0
    %118 = vmatpush1.bf16.msra.mxu0 %v101
    %119 = vmatprep.subr.bf16.mxu0 0
    %120 = vmatpush1.bf16.msra.mxu0 %v102
    %121 = vmatprep.subr.bf16.mxu0 0
    %122 = vmatpush1.bf16.msra.mxu0 %v103
    %123 = vmatprep.subr.bf16.mxu0 0
    %124 = vmatpush1.bf16.msra.mxu0 %v104
    %125 = vmatprep.subr.bf16.mxu0 0
    %126 = vmatpush1.bf16.msra.mxu0 %v105
    %127 = vmatprep.subr.bf16.mxu0 0
    %128 = vmatpush1.bf16.msra.mxu0 %v106
    %129 = vmatprep.subr.bf16.mxu0 0
    %130 = vmatpush1.bf16.msra.mxu0 %v107
    %131 = vmatprep.subr.bf16.mxu0 0
    %132 = vmatpush1.bf16.msra.mxu0 %v108
    %133 = vmatprep.subr.bf16.mxu0 0
    %134 = vmatpush1.bf16.msra.mxu0 0
    %135 = vmatprep.subr.bf16.mxu0 0
    %136 = vmatpush1.bf16.msra.mxu0 0
    %137 = vmatprep.subr.bf16.mxu0 0
    %138 = vmatpush1.bf16.msra.mxu0 0
    %139 = vmatprep.subr.bf16.mxu0 0
    %140 = vmatpush1.bf16.msra.mxu0 0
    %141 = vmatprep.subr.bf16.mxu0 0
    %142 = vmatpush1.bf16.msra.mxu0 0
    %143 = vmatprep.subr.bf16.mxu0 0
    %144 = vmatpush1.bf16.msra.mxu0 0
    %145 = vmatprep.subr.bf16.mxu0 0
    %146 = vmatpush1.bf16.msra.mxu0 0
    %147 = vmatprep.subr.bf16.mxu0 0
    %148 = vmatpush1.bf16.msra.mxu0 0
    %149 = vmatprep.mubr.bf16.mxu0 0
    %150 = vmatmul.mubr.bf16.gmra.mrb[0].mxu0 %v45
    %v151 = vpop.f32.mrb[0].mxu0
    %v152 = vadd.f32 0.0, %v151
    %v153 = vpop.f32.mrb[0].mxu0
    %v154 = vpop.f32.mrb[0].mxu0
    %v155 = vpop.f32.mrb[0].mxu0
    %156 = vdwg.mxu0
    %v157 = vld [vmem:[%s3] sm:$0xf]
    %v158 = vld [vmem:[%s3 + $0x4] sm:$0xf]
    %v159 = vld [vmem:[%s3 + $0x8] sm:$0xf]
    %v160 = vld [vmem:[%s3 + $0xc] sm:$0xf]
    %v161 = vld [vmem:[%s3 + $0x10] sm:$0xf]
    %v162 = vld [vmem:[%s3 + $0x14] sm:$0xf]
    %v163 = vld [vmem:[%s3 + $0x18] sm:$0xf]
    %v164 = vld [vmem:[%s3 + $0x1c] sm:$0xf]
    %v165 = vld [vmem:[%s3 + $0x20] sm:$0xf]
    %v166 = vld [vmem:[%s3 + $0x24] sm:$0xf]
    %v167 = vld [vmem:[%s3 + $0x28] sm:$0xf]
    %v168 = vld [vmem:[%s3 + $0x2c] sm:$0xf]
    %v169 = vld [vmem:[%s3 + $0x30] sm:$0xf]
    %v170 = vld [vmem:[%s3 + $0x34] sm:$0xf]
    %v171 = vld [vmem:[%s3 + $0x38] sm:$0xf]
    %v172 = vld [vmem:[%s3 + $0x3c] sm:$0xf]
    %v189 = vunpack.c.l.b16 %v157
    %v190 = vunpack.c.l.b16 %v158
    %v191 = vunpack.c.l.b16 %v159
    %v192 = vunpack.c.l.b16 %v160
    %v193 = vunpack.c.l.b16 %v161
    %v194 = vunpack.c.l.b16 %v162
    %v195 = vunpack.c.l.b16 %v163
    %v196 = vunpack.c.l.b16 %v164
    %v197 = vunpack.c.l.b16 %v165
    %v198 = vunpack.c.l.b16 %v166
    %v199 = vunpack.c.l.b16 %v167
    %v200 = vunpack.c.l.b16 %v168
    %v201 = vunpack.c.l.b16 %v169
    %v202 = vunpack.c.l.b16 %v170
    %v203 = vunpack.c.l.b16 %v171
    %v204 = vunpack.c.l.b16 %v172
    %v205 = vpack.c.b16 %v190, %v189
    %v206 = vpack.c.b16 %v192, %v191
    %v207 = vpack.c.b16 %v194, %v193
    %v208 = vpack.c.b16 %v196, %v195
    %v209 = vpack.c.b16 %v198, %v197
    %v210 = vpack.c.b16 %v200, %v199
    %v211 = vpack.c.b16 %v202, %v201
    %v212 = vpack.c.b16 %v204, %v203
    %221 = vmatprep.subr.bf16.mxu0 0
    %222 = vmatpush1.bf16.msra.mxu0 %v205
    %223 = vmatprep.subr.bf16.mxu0 0
    %224 = vmatpush1.bf16.msra.mxu0 %v206
    %225 = vmatprep.subr.bf16.mxu0 0
    %226 = vmatpush1.bf16.msra.mxu0 %v207
    %227 = vmatprep.subr.bf16.mxu0 0
    %228 = vmatpush1.bf16.msra.mxu0 %v208
    %229 = vmatprep.subr.bf16.mxu0 0
    %230 = vmatpush1.bf16.msra.mxu0 %v209
    %231 = vmatprep.subr.bf16.mxu0 0
    %232 = vmatpush1.bf16.msra.mxu0 %v210
    %233 = vmatprep.subr.bf16.mxu0 0
    %234 = vmatpush1.bf16.msra.mxu0 %v211
    %235 = vmatprep.subr.bf16.mxu0 0
    %236 = vmatpush1.bf16.msra.mxu0 %v212
    %237 = vmatprep.subr.bf16.mxu0 0
    %238 = vmatpush1.bf16.msra.mxu0 0
    %239 = vmatprep.subr.bf16.mxu0 0
    %240 = vmatpush1.bf16.msra.mxu0 0
    %241 = vmatprep.subr.bf16.mxu0 0
    %242 = vmatpush1.bf16.msra.mxu0 0
    %243 = vmatprep.subr.bf16.mxu0 0
    %244 = vmatpush1.bf16.msra.mxu0 0
    %245 = vmatprep.subr.bf16.mxu0 0
    %246 = vmatpush1.bf16.msra.mxu0 0
    %247 = vmatprep.subr.bf16.mxu0 0
    %248 = vmatpush1.bf16.msra.mxu0 0
    %249 = vmatprep.subr.bf16.mxu0 0
    %250 = vmatpush1.bf16.msra.mxu0 0
    %251 = vmatprep.subr.bf16.mxu0 0
    %252 = vmatpush1.bf16.msra.mxu0 0
    %253 = vmatprep.mubr.bf16.mxu0 0
    %254 = vmatmul.mubr.bf16.gmra.mrb[0].mxu0 %v52
    %v255 = vpop.f32.mrb[0].mxu0
    %v256 = vadd.f32 0.0, %v255
    %v257 = vpop.f32.mrb[0].mxu0
    %v258 = vpop.f32.mrb[0].mxu0
    %v259 = vpop.f32.mrb[0].mxu0
    %260 = vdwg.mxu0
    %v261 = vpack.c.bf16 %v152, %v152
    %v262 = vld [vmem:[%s4] sm:$0xff]
    %v263 = vld [vmem:[%s4 + $0x8] sm:$0xff]
    %v264 = vld [vmem:[%s4 + $0x10] sm:$0xff]
    %v265 = vld [vmem:[%s4 + $0x18] sm:$0xff]
    %v266 = vpack.c.bf16 %v256, %v256
    %v267 = vld [vmem:[%s5] sm:$0xff]
    %v268 = vld [vmem:[%s5 + $0x8] sm:$0xff]
    %v269 = vld [vmem:[%s5 + $0x10] sm:$0xff]
    %v270 = vld [vmem:[%s5 + $0x18] sm:$0xff]
    %v275 = vunpack.c.l.b16 %v267
    %v276 = vunpack.c.h.b16 %v267
    %v277 = vunpack.c.l.b16 %v268
    %v278 = vunpack.c.h.b16 %v268
    %v279 = vunpack.c.l.b16 %v269
    %v280 = vunpack.c.h.b16 %v269
    %v281 = vunpack.c.l.b16 %v270
    %v282 = vunpack.c.h.b16 %v270
    %v283 = vpack.c.b16 %v277, %v275
    %v284 = vpack.c.b16 %v278, %v276
    %v285 = vpack.c.b16 %v281, %v279
    %v286 = vpack.c.b16 %v282, %v280
    %vm291 = vcmask 261120
    %v293 = vsel %vm291, %v266, 0
    %295 = vmatprep.subr.bf16.mxu0 %v284
    %296 = vmatpush1.bf16.msra.mxu0 %v283
    %297 = vmatprep.subr.bf16.mxu0 %v286
    %298 = vmatpush1.bf16.msra.mxu0 %v285
    %299 = vmatprep.subr.bf16.mxu0 0
    %300 = vmatpush1.bf16.msra.mxu0 0
    %301 = vmatprep.subr.bf16.mxu0 0
    %302 = vmatpush1.bf16.msra.mxu0 0
    %303 = vmatprep.subr.bf16.mxu0 0
    %304 = vmatpush1.bf16.msra.mxu0 0
    %305 = vmatprep.subr.bf16.mxu0 0
    %306 = vmatpush1.bf16.msra.mxu0 0
    %307 = vmatprep.subr.bf16.mxu0 0
    %308 = vmatpush1.bf16.msra.mxu0 0
    %309 = vmatprep.subr.bf16.mxu0 0
    %310 = vmatpush1.bf16.msra.mxu0 0
    %311 = vmatprep.subr.bf16.mxu0 0
    %312 = vmatpush1.bf16.msra.mxu0 0
    %313 = vmatprep.subr.bf16.mxu0 0
    %314 = vmatpush1.bf16.msra.mxu0 0
    %315 = vmatprep.subr.bf16.mxu0 0
    %316 = vmatpush1.bf16.msra.mxu0 0
    %317 = vmatprep.subr.bf16.mxu0 0
    %318 = vmatpush1.bf16.msra.mxu0 0
    %319 = vmatprep.subr.bf16.mxu0 0
    %320 = vmatpush1.bf16.msra.mxu0 0
    %321 = vmatprep.subr.bf16.mxu0 0
    %322 = vmatpush1.bf16.msra.mxu0 0
    %323 = vmatprep.subr.bf16.mxu0 0
    %324 = vmatpush1.bf16.msra.mxu0 0
    %325 = vmatprep.subr.bf16.mxu0 0
    %326 = vmatpush1.bf16.msra.mxu0 0
    %327 = vmatprep.mubr.bf16.mxu0 0
    %328 = vmatmul.mubr.bf16.gmra.mrb[0].mxu0 %v293
    %v329 = vpop.f32.mrb[0].mxu0
    %v330 = vadd.f32 0.0, %v329
    %v331 = vpop.f32.mrb[0].mxu0
    %v332 = vadd.f32 0.0, %v331
    %v333 = vpop.f32.mrb[0].mxu0
    %v334 = vpop.f32.mrb[0].mxu0
    %335 = vdwg.mxu0
    %v340 = vunpack.c.l.b16 %v262
    %v341 = vunpack.c.h.b16 %v262
    %v342 = vunpack.c.l.b16 %v263
    %v343 = vunpack.c.h.b16 %v263
    %v344 = vunpack.c.l.b16 %v264
    %v345 = vunpack.c.h.b16 %v264
    %v346 = vunpack.c.l.b16 %v265
    %v347 = vunpack.c.h.b16 %v265
    %v348 = vpack.c.b16 %v342, %v340
    %v349 = vpack.c.b16 %v343, %v341
    %v350 = vpack.c.b16 %v346, %v344
    %v351 = vpack.c.b16 %v347, %v345
    %v357 = vsel %vm291, %v261, 0
    %359 = vmatprep.subr.bf16.mxu0 %v349
    %360 = vmatpush1.bf16.msra.mxu0 %v348
    %361 = vmatprep.subr.bf16.mxu0 %v351
    %362 = vmatpush1.bf16.msra.mxu0 %v350
    %363 = vmatprep.subr.bf16.mxu0 0
    %364 = vmatpush1.bf16.msra.mxu0 0
    %365 = vmatprep.subr.bf16.mxu0 0
    %366 = vmatpush1.bf16.msra.mxu0 0
    %367 = vmatprep.subr.bf16.mxu0 0
    %368 = vmatpush1.bf16.msra.mxu0 0
    %369 = vmatprep.subr.bf16.mxu0 0
    %370 = vmatpush1.bf16.msra.mxu0 0
    %371 = vmatprep.subr.bf16.mxu0 0
    %372 = vmatpush1.bf16.msra.mxu0 0
    %373 = vmatprep.subr.bf16.mxu0 0
    %374 = vmatpush1.bf16.msra.mxu0 0
    %375 = vmatprep.subr.bf16.mxu0 0
    %376 = vmatpush1.bf16.msra.mxu0 0
    %377 = vmatprep.subr.bf16.mxu0 0
    %378 = vmatpush1.bf16.msra.mxu0 0
    %379 = vmatprep.subr.bf16.mxu0 0
    %380 = vmatpush1.bf16.msra.mxu0 0
    %381 = vmatprep.subr.bf16.mxu0 0
    %382 = vmatpush1.bf16.msra.mxu0 0
    %383 = vmatprep.subr.bf16.mxu0 0
    %384 = vmatpush1.bf16.msra.mxu0 0
    %385 = vmatprep.subr.bf16.mxu0 0
    %386 = vmatpush1.bf16.msra.mxu0 0
    %387 = vmatprep.subr.bf16.mxu0 0
    %388 = vmatpush1.bf16.msra.mxu0 0
    %389 = vmatprep.subr.bf16.mxu0 0
    %390 = vmatpush1.bf16.msra.mxu0 0
    %391 = vmatprep.mubr.bf16.mxu0 0
    %392 = vmatmul.mubr.bf16.gmra.mrb[0].mxu0 %v357
    %v393 = vpop.f32.mrb[0].mxu0
    %v394 = vadd.f32 %v330, %v393
    %v395 = vpop.f32.mrb[0].mxu0
    %v396 = vadd.f32 %v332, %v395
    %v397 = vpop.f32.mrb[0].mxu0
    %v398 = vpop.f32.mrb[0].mxu0
    %399 = vdwg.mxu0
    %v400 = vld [vmem:[%s6] sm:$0x3]
    %v402 = vlaneseq
    %v403 = vshrl.u32 %v402, 7
    %v404 = vsub.s32 0, %v403
    %v405 = vrot.slane %v400, %v404
    %v406 = vlaneseq
    %v407 = vshrl.u32 %v406, 7
    %v408 = vsub.s32 1, %v407
    %v409 = vrot.slane %v400, %v408
    %v412 = vadd.f32 %v394, %v405
    %v413 = vadd.f32 %v396, %v409
    %v414 = vmax.f32 %v412, 0.0
    %v415 = vmax.f32 %v413, 0.0
    %v416 = vpack.c.bf16 %v414, %v414
    %v417 = vpack.c.bf16 %v415, %v415
    %v418 = vld [vmem:[%s7] sm:$0xf]
    %v419 = vld [vmem:[%s7 + $0x4] sm:$0xf]
    %v420 = vld [vmem:[%s7 + $0x8] sm:$0xf]
    %v421 = vld [vmem:[%s7 + $0xc] sm:$0xf]
    %v422 = vld [vmem:[%s7 + $0x10] sm:$0xf]
    %v423 = vld [vmem:[%s7 + $0x14] sm:$0xf]
    %v424 = vld [vmem:[%s7 + $0x18] sm:$0xf]
    %v425 = vld [vmem:[%s7 + $0x1c] sm:$0xf]
    %v426 = vld [vmem:[%s7 + $0x20] sm:$0xf]
    %v427 = vld [vmem:[%s7 + $0x24] sm:$0xf]
    %v428 = vld [vmem:[%s7 + $0x28] sm:$0xf]
    %v429 = vld [vmem:[%s7 + $0x2c] sm:$0xf]
    %v430 = vld [vmem:[%s7 + $0x30] sm:$0xf]
    %v431 = vld [vmem:[%s7 + $0x34] sm:$0xf]
    %v432 = vld [vmem:[%s7 + $0x38] sm:$0xf]
    %v433 = vld [vmem:[%s7 + $0x3c] sm:$0xf]
    %v434 = vld [vmem:[%s7 + $0x40] sm:$0xf]
    %v435 = vld [vmem:[%s7 + $0x44] sm:$0xf]
    %v436 = vld [vmem:[%s7 + $0x48] sm:$0xf]
    %v437 = vld [vmem:[%s7 + $0x4c] sm:$0xf]
    %v438 = vld [vmem:[%s7 + $0x50] sm:$0xf]
    %v439 = vld [vmem:[%s7 + $0x54] sm:$0xf]
    %v440 = vld [vmem:[%s7 + $0x58] sm:$0xf]
    %v441 = vld [vmem:[%s7 + $0x5c] sm:$0xf]
    %v442 = vld [vmem:[%s7 + $0x60] sm:$0xf]
    %v443 = vld [vmem:[%s7 + $0x64] sm:$0xf]
    %v444 = vld [vmem:[%s7 + $0x68] sm:$0xf]
    %v445 = vld [vmem:[%s7 + $0x6c] sm:$0xf]
    %v446 = vld [vmem:[%s7 + $0x70] sm:$0xf]
    %v447 = vld [vmem:[%s7 + $0x74] sm:$0xf]
    %v448 = vld [vmem:[%s7 + $0x78] sm:$0xf]
    %v449 = vld [vmem:[%s7 + $0x7c] sm:$0xf]
    %v450 = vld [vmem:[%s8] sm:$0x1]
    %v452 = vlaneseq
    %v453 = vshrl.u32 %v452, 7
    %v454 = vsub.s32 0, %v453
    %v455 = vrot.slane %v450, %v454
    %v489 = vunpack.c.l.b16 %v418
    %v490 = vunpack.c.l.b16 %v419
    %v491 = vunpack.c.l.b16 %v420
    %v492 = vunpack.c.l.b16 %v421
    %v493 = vunpack.c.l.b16 %v422
    %v494 = vunpack.c.l.b16 %v423
    %v495 = vunpack.c.l.b16 %v424
    %v496 = vunpack.c.l.b16 %v425
    %v497 = vunpack.c.l.b16 %v426
    %v498 = vunpack.c.l.b16 %v427
    %v499 = vunpack.c.l.b16 %v428
    %v500 = vunpack.c.l.b16 %v429
    %v501 = vunpack.c.l.b16 %v430
    %v502 = vunpack.c.l.b16 %v431
    %v503 = vunpack.c.l.b16 %v432
    %v504 = vunpack.c.l.b16 %v433
    %v505 = vunpack.c.l.b16 %v434
    %v506 = vunpack.c.l.b16 %v435
    %v507 = vunpack.c.l.b16 %v436
    %v508 = vunpack.c.l.b16 %v437
    %v509 = vunpack.c.l.b16 %v438
    %v510 = vunpack.c.l.b16 %v439
    %v511 = vunpack.c.l.b16 %v440
    %v512 = vunpack.c.l.b16 %v441
    %v513 = vunpack.c.l.b16 %v442
    %v514 = vunpack.c.l.b16 %v443
    %v515 = vunpack.c.l.b16 %v444
    %v516 = vunpack.c.l.b16 %v445
    %v517 = vunpack.c.l.b16 %v446
    %v518 = vunpack.c.l.b16 %v447
    %v519 = vunpack.c.l.b16 %v448
    %v520 = vunpack.c.l.b16 %v449
    %v521 = vpack.c.b16 %v490, %v489
    %v522 = vpack.c.b16 %v492, %v491
    %v523 = vpack.c.b16 %v494, %v493
    %v524 = vpack.c.b16 %v496, %v495
    %v525 = vpack.c.b16 %v498, %v497
    %v526 = vpack.c.b16 %v500, %v499
    %v527 = vpack.c.b16 %v502, %v501
    %v528 = vpack.c.b16 %v504, %v503
    %v529 = vpack.c.b16 %v506, %v505
    %v530 = vpack.c.b16 %v508, %v507
    %v531 = vpack.c.b16 %v510, %v509
    %v532 = vpack.c.b16 %v512, %v511
    %v533 = vpack.c.b16 %v514, %v513
    %v534 = vpack.c.b16 %v516, %v515
    %v535 = vpack.c.b16 %v518, %v517
    %v536 = vpack.c.b16 %v520, %v519
    %553 = vmatprep.subr.bf16.mxu0 0
    %554 = vmatpush1.bf16.msra.mxu0 %v521
    %555 = vmatprep.subr.bf16.mxu0 0
    %556 = vmatpush1.bf16.msra.mxu0 %v522
    %557 = vmatprep.subr.bf16.mxu0 0
    %558 = vmatpush1.bf16.msra.mxu0 %v523
    %559 = vmatprep.subr.bf16.mxu0 0
    %560 = vmatpush1.bf16.msra.mxu0 %v524
    %561 = vmatprep.subr.bf16.mxu0 0
    %562 = vmatpush1.bf16.msra.mxu0 %v525
    %563 = vmatprep.subr.bf16.mxu0 0
    %564 = vmatpush1.bf16.msra.mxu0 %v526
    %565 = vmatprep.subr.bf16.mxu0 0
    %566 = vmatpush1.bf16.msra.mxu0 %v527
    %567 = vmatprep.subr.bf16.mxu0 0
    %568 = vmatpush1.bf16.msra.mxu0 %v528
    %569 = vmatprep.subr.bf16.mxu0 0
    %570 = vmatpush1.bf16.msra.mxu0 %v529
    %571 = vmatprep.subr.bf16.mxu0 0
    %572 = vmatpush1.bf16.msra.mxu0 %v530
    %573 = vmatprep.subr.bf16.mxu0 0
    %574 = vmatpush1.bf16.msra.mxu0 %v531
    %575 = vmatprep.subr.bf16.mxu0 0
    %576 = vmatpush1.bf16.msra.mxu0 %v532
    %577 = vmatprep.subr.bf16.mxu0 0
    %578 = vmatpush1.bf16.msra.mxu0 %v533
    %579 = vmatprep.subr.bf16.mxu0 0
    %580 = vmatpush1.bf16.msra.mxu0 %v534
    %581 = vmatprep.subr.bf16.mxu0 0
    %582 = vmatpush1.bf16.msra.mxu0 %v535
    %583 = vmatprep.subr.bf16.mxu0 0
    %584 = vmatpush1.bf16.msra.mxu0 %v536
    %585 = vmatprep.mubr.bf16.mxu0 %v417
    %586 = vmatmul.mubr.bf16.gmra.mrb[0].mxu0 %v416
    %v587 = vpop.f32.mrb[0].mxu0
    %v588 = vadd.f32 %v455, %v587
    %v589 = vpop.f32.mrb[0].mxu0
    %v590 = vpop.f32.mrb[0].mxu0
    %v591 = vpop.f32.mrb[0].mxu0
    %592 = vdwg.mxu0
    %v593 = vmax.f32 %v588, 0.0
    %v594 = vpack.c.bf16 %v593, %v593
    %v595 = vld [vmem:[%s9] sm:$0x1]
    %v597 = vlaneseq
    %v598 = vshrl.u32 %v597, 7
    %v599 = vsub.s32 0, %v598
    %v600 = vrot.slane %v595, %v599
    %v603 = vsel %vm291, %v594, 0
    %v606 = vsel %vm291, %v101, 0
    %v609 = vsel %vm291, %v102, 0
    %v612 = vsel %vm291, %v103, 0
    %v615 = vsel %vm291, %v104, 0
    %v618 = vsel %vm291, %v105, 0
    %v621 = vsel %vm291, %v106, 0
    %v624 = vsel %vm291, %v107, 0
    %v627 = vsel %vm291, %v108, 0
    %629 = vmatprep.subr.bf16.mxu0 0
    %630 = vmatpush1.bf16.xpose.msra.mxu0 %v606
    %631 = vmatprep.subr.bf16.mxu0 0
    %632 = vmatpush1.bf16.xpose.msra.mxu0 %v609
    %633 = vmatprep.subr.bf16.mxu0 0
    %634 = vmatpush1.bf16.xpose.msra.mxu0 %v612
    %635 = vmatprep.subr.bf16.mxu0 0
    %636 = vmatpush1.bf16.xpose.msra.mxu0 %v615
    %637 = vmatprep.subr.bf16.mxu0 0
    %638 = vmatpush1.bf16.xpose.msra.mxu0 %v618
    %639 = vmatprep.subr.bf16.mxu0 0
    %640 = vmatpush1.bf16.xpose.msra.mxu0 %v621
    %641 = vmatprep.subr.bf16.mxu0 0
    %642 = vmatpush1.bf16.xpose.msra.mxu0 %v624
    %643 = vmatprep.subr.bf16.mxu0 0
    %644 = vmatpush1.bf16.xpose.msra.mxu0 %v627
    %645 = vmatprep.subr.bf16.mxu0 0
    %646 = vmatpush1.bf16.xpose.msra.mxu0 0
    %647 = vmatprep.subr.bf16.mxu0 0
    %648 = vmatpush1.bf16.xpose.msra.mxu0 0
    %649 = vmatprep.subr.bf16.mxu0 0
    %650 = vmatpush1.bf16.xpose.msra.mxu0 0
    %651 = vmatprep.subr.bf16.mxu0 0
    %652 = vmatpush1.bf16.xpose.msra.mxu0 0
    %653 = vmatprep.subr.bf16.mxu0 0
    %654 = vmatpush1.bf16.xpose.msra.mxu0 0
    %655 = vmatprep.subr.bf16.mxu0 0
    %656 = vmatpush1.bf16.xpose.msra.mxu0 0
    %657 = vmatprep.subr.bf16.mxu0 0
    %658 = vmatpush1.bf16.xpose.msra.mxu0 0
    %659 = vmatprep.subr.bf16.mxu0 0
    %660 = vmatpush1.bf16.xpose.msra.mxu0 0
    %661 = vmatprep.mubr.bf16.mxu0 0
    %662 = vmatmul.mubr.bf16.gmra.mrb[0].mxu0 %v603
    %v663 = vpop.f32.mrb[0].mxu0
    %v664 = vadd.f32 %v600, %v663
    %v665 = vpop.f32.mrb[0].mxu0
    %v666 = vpop.f32.mrb[0].mxu0
    %v667 = vpop.f32.mrb[0].mxu0
    %668 = vdwg.mxu0
    %v669 = vxor.u32 %v664, 2147483648
    %v670 = vmul.f32 %v669, 1.442695
    %v671 = vpow.pop %v670
    %v672 = vadd.f32 %v671, 1.0
    %v673 = vrcp.pop %v672
    %v674 = vmul.f32 1.0, %v673
    %675 = vst [vmem:[#allocation2] sm:$0xff] %v674
    // Predicated region
    $region42: #{compgcn_conve_forward.1} parent=1 // pred_check
      _
    $region43: #{compgcn_conve_forward.1} parent=1 // pred_check_branch
      %677 = sbr.rel (0) target = $region45
    $region44: #{compgcn_conve_forward.1} parent=1 // pred_region
      %s679 = ssub.s32 128, 128
      %680 = vsyncadd [#allocation3], %s679
      %s682 = sshll.u32 [#allocation2], 4
      %s683 = int_to_ptr.vmem [resolvable:$true] %s682
      %685 = dma.vmem_to_hbm [thread:$0]  %s683, 128, %s10, [#allocation3]
    $region45: #{compgcn_conve_forward.1} parent=1 // pred_fallthru
      _
    // Predicated region
    $region46: #{compgcn_conve_forward.1} parent=1 // pred_check
      _
    $region47: #{compgcn_conve_forward.1} parent=1 // pred_check_branch
      %687 = sbr.rel (0) target = $region49
    $region48: #{compgcn_conve_forward.1} parent=1 // pred_region
      %688 = dma.done [#allocation3], 128
    $region49: #{compgcn_conve_forward.1} parent=1 // pred_fallthru
      _
    %689 = vsyncpa [#allocation3], 1

</llo_original>
